<compile_context>
chip_gen: v6e
topology: v6e:2x2x1
jax: 0.10.0
libtpu: 0.0.40
codegen_flags: <defaults>
</compile_context>

<pallas_src>
import math

import jax
import jax.numpy as jnp
from jax.experimental import pallas as pl
from jax.experimental.pallas import tpu as pltpu

_NEG = -1e30  # finite "-inf" for the masked max aggregation
_VMEM_LIMIT = 48 * 1024 * 1024  # scoped-VMEM headroom (safe on v5e/v6e/v7x)


# ----------------------------------------------------------------------------
# Kernel 1: ChebConv + ReLU + EdgeConv per-node projections (A, B)
# ----------------------------------------------------------------------------
def _make_cheb_proj_kernel(k_cheb):
    def kernel(lap_ref, x_ref, wc_ref, bc_ref, wsum_ref, wdiff_ref, b1_ref,
               a_ref, b_ref):
        lap = lap_ref[...]                       # [N, N]  scaled Laplacian
        x = x_ref[...]                           # [N, F_in]

        # Chebyshev recurrence: T0 = x, T1 = L x, Tk = 2 L T(k-1) - T(k-2)
        h = jnp.dot(x, wc_ref[0], preferred_element_type=jnp.float32)
        if k_cheb > 1:
            z_prev = x
            z_cur = jnp.dot(lap, x, preferred_element_type=jnp.float32)
            h = h + jnp.dot(z_cur, wc_ref[1],
                            preferred_element_type=jnp.float32)
            for k in range(2, k_cheb):
                z_next = (2.0 * jnp.dot(lap, z_cur,
                                        preferred_element_type=jnp.float32)
                          - z_prev)
                h = h + jnp.dot(z_next, wc_ref[k],
                                preferred_element_type=jnp.float32)
                z_prev, z_cur = z_cur, z_next

        h = jnp.maximum(h + bc_ref[...], 0.0)    # ChebConv bias + ReLU

        # EdgeConv first-layer split:
        #   MLP1([h_i || h_j - h_i]) = h_i @ (W1s - W1d) + h_j @ W1d + b1
        a_ref[...] = (jnp.dot(h, wsum_ref[...],
                              preferred_element_type=jnp.float32)
                      + b1_ref[...])
        b_ref[...] = jnp.dot(h, wdiff_ref[...],
                             preferred_element_type=jnp.float32)
    return kernel


# ----------------------------------------------------------------------------
# Kernel 2: EdgeConv pairwise MLP + masked max aggregation (tiled grid)
# ----------------------------------------------------------------------------
def _edgeconv_kernel(a_ref, b_ref, adj_ref, w2_ref, b2_ref, out_ref):
    j = pl.program_id(1)

    @pl.when(j == 0)
    def _init():
        # Output block is resident across the reduction axis (same block index
        # for all j) -> accumulate the running max directly in out_ref.
        out_ref[...] = jnp.full(out_ref.shape, _NEG, out_ref.dtype)

    a = a_ref[...]                               # [ti, 2*f1] target rows
    b = b_ref[...]                               # [tj, 2*f1] source rows
    ti, two_f1 = a.shape
    tj = b.shape[0]
    f2 = w2_ref.shape[1]

    # Pairwise hidden layer lives only in VMEM/vregs, never in HBM.
    hidden = jnp.maximum(a[:, None, :] + b[None, :, :], 0.0)   # [ti, tj, 2f1]
    # Collapsing the leading dims keeps the lane dim (2f1) untouched.
    msg = jnp.dot(hidden.reshape(ti * tj, two_f1), w2_ref[...],
                  preferred_element_type=jnp.float32).reshape(ti, tj, f2)

    mask = (adj_ref[...] != 0.0)[:, :, None]     # neighbors j of target i
    msg = jnp.where(mask, msg, _NEG)
    out_ref[...] = jnp.maximum(out_ref[...], jnp.max(msg, axis=1))

    @pl.when(j == pl.num_programs(1) - 1)
    def _finalize():
        m = out_ref[...]
        # bias added after the max (constant shift); isolated nodes -> 0.
        out_ref[...] = jnp.where(m > 0.5 * _NEG, m + b2_ref[...], 0.0)


# ----------------------------------------------------------------------------
# Kernel 3: mean readout (pool matmul) fused with final fc
# ----------------------------------------------------------------------------
def _readout_fc_kernel(pool_ref, e_ref, wfc_ref, bfc_ref, out_ref):
    pooled = jnp.dot(pool_ref[...], e_ref[...],
                     preferred_element_type=jnp.float32)
    out_ref[...] = (jnp.dot(pooled, wfc_ref[...],
                            preferred_element_type=jnp.float32)
                    + bfc_ref[...])


# ----------------------------------------------------------------------------
# Tiling helpers
# ----------------------------------------------------------------------------
def _pick_row_tile(n, cap=128):
    """Largest divisor of n that is a multiple of 8 sublanes, capped; falls
    back to the full dimension when n is not sublane-aligned."""
    if n % 8 != 0:
        return n
    t = min(cap, n)
    t = (t // 8) * 8
    while t > 8 and n % t != 0:
        t -= 8
    return t if n % t == 0 else n


def _pick_col_tile(n):
    """Neighbor (lane) tile: last block dim must be a multiple of 128 lanes or
    the full dimension."""
    return 128 if n % 128 == 0 else n


def _pick_tiles(n, two_f1, hidden_budget_bytes=8 * 1024 * 1024):
    """Pick (ti, tj) jointly so the [ti, tj, 2*f1] f32 pairwise intermediate
    stays under the budget (keeps compiler temporaries well inside VMEM)."""
    tj = _pick_col_tile(n)
    ti = _pick_row_tile(n)
    if n % 8 == 0:
        while ti > 8 and ti * tj * two_f1 * 4 > hidden_budget_bytes:
            nt = ti - 8
            while nt > 8 and n % nt != 0:
                nt -= 8
            if nt == ti:
                break
            ti = nt
    return ti, tj


# ----------------------------------------------------------------------------
# Forward wrapper
# ----------------------------------------------------------------------------
def cheb_edge_forward(x, adj, batch, params, num_graphs):
    n, f_in = x.shape
    wc, bc, w1, b1, w2, b2, wfc, bfc = params
    k_cheb, _, f1 = wc.shape
    two_f1 = w1.shape[0]
    f2 = w2.shape[1]

    # --- cheap elementwise input prep (glue; heavy matmuls are in kernels) ---
    # Scaled Laplacian for ChebConv (sym norm, lambda_max = 2):
    #   L_hat = -D^{-1/2} A D^{-1/2}
    deg = jnp.sum(adj, axis=1)
    dinv = jnp.where(deg > 0, 1.0 / jnp.sqrt(deg), 0.0)
    lap = -(dinv[:, None] * adj * dinv[None, :])

    # EdgeConv first Linear split (see kernel 1 header).
    w1_self, w1_diff = w1[:f1], w1[f1:]
    w1_sum = w1_self - w1_diff

    # Mean-readout matrix [G, N] built from `batch`.
    one_hot = (batch[None, :] == jnp.arange(num_graphs)[:, None]).astype(
        jnp.float32)
    counts = jnp.maximum(one_hot.sum(axis=1, keepdims=True), 1.0)
    pool = one_hot / counts

    full = lambda shape: pl.BlockSpec(shape, lambda i: (0,) * len(shape))

    # --- K1: ChebConv + ReLU + EdgeConv per-node projections ------------------
    a_nodes, b_nodes = pl.pallas_call(
        _make_cheb_proj_kernel(k_cheb),
        out_shape=(jax.ShapeDtypeStruct((n, two_f1), jnp.float32),
                   jax.ShapeDtypeStruct((n, two_f1), jnp.float32)),
        grid=(1,),
        in_specs=[
            full((n, n)),                 # lap
            full((n, f_in)),              # x
            full((k_cheb, f_in, f1)),     # Cheb weights [K, F_in, f1]
            full((1, f1)),                # Cheb bias
            full((f1, two_f1)),           # W1_self - W1_diff
            full((f1, two_f1)),           # W1_diff
            full((1, two_f1)),            # b1
        ],
        out_specs=(full((n, two_f1)), full((n, two_f1))),
        compiler_params=pltpu.CompilerParams(
            dimension_semantics=("arbitrary",),
            vmem_limit_bytes=_VMEM_LIMIT),
    )(lap, x, wc, bc, w1_sum, w1_diff, b1)

    # --- K2: EdgeConv pairwise MLP + masked max over neighbors ----------------
    ti, tj = _pick_tiles(n, two_f1)
    edge_out = pl.pallas_call(
        _edgeconv_kernel,
        out_shape=jax.ShapeDtypeStruct((n, f2), jnp.float32),
        grid=(n // ti, n // tj),
        in_specs=[
            pl.BlockSpec((ti, two_f1), lambda i, j: (i, 0)),   # A (target rows)
            pl.BlockSpec((tj, two_f1), lambda i, j: (j, 0)),   # B (source rows)
            pl.BlockSpec((ti, tj), lambda i, j: (i, j)),       # adj tile
            pl.BlockSpec((two_f1, f2), lambda i, j: (0, 0)),   # W2 (resident)
            pl.BlockSpec((1, f2), lambda i, j: (0, 0)),        # b2 (resident)
        ],
        out_specs=pl.BlockSpec((ti, f2), lambda i, j: (i, 0)),
        compiler_params=pltpu.CompilerParams(
            dimension_semantics=("parallel", "arbitrary"),
            vmem_limit_bytes=_VMEM_LIMIT),
    )(a_nodes, b_nodes, adj, w2, b2)

    # --- K3: mean readout + final fc ------------------------------------------
    out = pl.pallas_call(
        _readout_fc_kernel,
        out_shape=jax.ShapeDtypeStruct((num_graphs, f2), jnp.float32),
        grid=(1,),
        in_specs=[full((num_graphs, n)), full((n, f2)), full((f2, f2)),
                  full((1, f2))],
        out_specs=full((num_graphs, f2)),
        compiler_params=pltpu.CompilerParams(
            dimension_semantics=("arbitrary",)),
    )(pool, edge_out, wfc, bfc)
    return out


# ----------------------------------------------------------------------------
# Parameter init mirroring Abstract_GNN._reset_parameters():
#   dim > 1 -> xavier_uniform_, dim == 1 -> uniform_(0, 1)
# ----------------------------------------------------------------------------
def init_params(key, f_in, f1, f2, k_cheb):
    ks = jax.random.split(key, 8)

    def xavier(k, shape, fan_in, fan_out):
        bound = math.sqrt(6.0 / (fan_in + fan_out))
        return jax.random.uniform(k, shape, jnp.float32, -bound, bound)

    wc = xavier(ks[0], (k_cheb, f_in, f1), f_in, f1)        # ChebConv weights
    bc = jax.random.uniform(ks[1], (1, f1), jnp.float32)    # ChebConv bias
    w1 = xavier(ks[2], (2 * f1, 2 * f1), 2 * f1, 2 * f1)    # EdgeConv Linear1
    b1 = jax.random.uniform(ks[3], (1, 2 * f1), jnp.float32)
    w2 = xavier(ks[4], (2 * f1, f2), 2 * f1, f2)            # EdgeConv Linear2
    b2 = jax.random.uniform(ks[5], (1, f2), jnp.float32)
    wfc = xavier(ks[6], (f2, f2), f2, f2)                   # final fc
    bfc = jax.random.uniform(ks[7], (1, f2), jnp.float32)
    return wc, bc, w1, b1, w2, b2, wfc, bfc


# ----------------------------------------------------------------------------
# Pure-JAX reference (independent formulation: explicit [N,N,2f1] concat)
# ----------------------------------------------------------------------------
def reference_forward(x, adj, batch, params, num_graphs):
    wc, bc, w1, b1, w2, b2, wfc, bfc = params
    n = x.shape[0]
    k_cheb, _, f1 = wc.shape

    deg = adj.sum(axis=1)
    dinv = jnp.where(deg > 0, 1.0 / jnp.sqrt(deg), 0.0)
    lap = -(dinv[:, None] * adj * dinv[None, :])

    h = x @ wc[0]
    if k_cheb > 1:
        z_prev, z_cur = x, lap @ x
        h = h + z_cur @ wc[1]
        for k in range(2, k_cheb):
            z_next = 2.0 * (lap @ z_cur) - z_prev
            h = h + z_next @ wc[k]
            z_prev, z_cur = z_cur, z_next
    h = jnp.maximum(h + bc, 0.0)

    hi = jnp.broadcast_to(h[:, None, :], (n, n, f1))
    hj = jnp.broadcast_to(h[None, :, :], (n, n, f1))
    feat = jnp.concatenate([hi, hj - hi], axis=-1)
    hid = jnp.maximum(jnp.einsum("ijk,kl->ijl", feat, w1) + b1, 0.0)
    msg = jnp.einsum("ijk,kl->ijl", hid, w2) + b2
    msg = jnp.where((adj != 0.0)[:, :, None], msg, -jnp.inf)
    agg = jnp.max(msg, axis=1)
    agg = jnp.where(jnp.isfinite(agg), agg, 0.0)

    one_hot = (batch[None, :] == jnp.arange(num_graphs)[:, None]).astype(
        jnp.float32)
    counts = jnp.maximum(one_hot.sum(axis=1, keepdims=True), 1.0)
    pooled = (one_hot / counts) @ agg
    return pooled @ wfc + bfc


if __name__ == "__main__":
    key = jax.random.PRNGKey(0)
    k_x, k_adj, k_p = jax.random.split(key, 3)

    # Small shapes consistent with the module: ChebConv(num_nodes, f1, k)
    # implies input feature dim == num_nodes.
    num_nodes = 16
    f_in = num_nodes
    f1, f2, k_cheb = 64, 32, 3
    num_graphs = 2

    x = jax.random.normal(k_x, (num_nodes, f_in), jnp.float32)

    # Symmetric weighted adjacency; ring edges guarantee every node has a
    # neighbor; no self-loops.
    r = jax.random.uniform(k_adj, (num_nodes, num_nodes))
    a = jnp.where(r > 0.6, r, 0.0)
    a = jnp.maximum(a, a.T)
    ring = (jnp.eye(num_nodes, k=1) + jnp.eye(num_nodes, k=-1)
            + jnp.eye(num_nodes, k=num_nodes - 1)
            + jnp.eye(num_nodes, k=-(num_nodes - 1)))
    adj = (jnp.maximum(a, ring) * (1.0 - jnp.eye(num_nodes))).astype(jnp.float32)

    # batch: first half -> graph 0, second half -> graph 1.
    batch = jnp.concatenate([
        jnp.zeros(num_nodes // 2, jnp.int32),
        jnp.ones(num_nodes - num_nodes // 2, jnp.int32),
    ])

    params = init_params(k_p, f_in, f1, f2, k_cheb)

    out = cheb_edge_forward(x, adj, batch, params, num_graphs)
    out = jax.block_until_ready(out)

    ref = reference_forward(x, adj, batch, params, num_graphs)
    assert out.shape == (num_graphs, f2)
    assert jnp.allclose(out, ref, atol=2e-3, rtol=2e-3), "mismatch vs reference"

    print("KERNEL_OK")
</pallas_src>

<mosaic_0001>
module attributes {stable_mosaic.version = 11 : i64} {
  func.func @kernel(%arg0: i32, %arg1: memref<16x16xf32, #tpu.memory_space<vmem>>, %arg2: memref<16x16xf32, #tpu.memory_space<vmem>>, %arg3: memref<3x16x64xf32, #tpu.memory_space<vmem>>, %arg4: memref<1x64xf32, #tpu.memory_space<vmem>>, %arg5: memref<64x128xf32, #tpu.memory_space<vmem>>, %arg6: memref<64x128xf32, #tpu.memory_space<vmem>>, %arg7: memref<1x128xf32, #tpu.memory_space<vmem>>, %arg8: memref<16x128xf32, #tpu.memory_space<vmem>>, %arg9: memref<16x128xf32, #tpu.memory_space<vmem>>) attributes {dimension_semantics = [#tpu.dimension_semantics<arbitrary>], iteration_bounds = array<i64: 1>, scalar_prefetch = 0 : i64, scratch_operands = 0 : i64, tpu.core_type = #tpu.core_type<tc>, window_params = [{pipeline_mode = #tpu.pipeline_mode<synchronous>, transform_indices = @transform_0, window_bounds = array<i64: 16, 16>}, {pipeline_mode = #tpu.pipeline_mode<synchronous>, transform_indices = @transform_1, window_bounds = array<i64: 16, 16>}, {pipeline_mode = #tpu.pipeline_mode<synchronous>, transform_indices = @transform_2, window_bounds = array<i64: 3, 16, 64>}, {pipeline_mode = #tpu.pipeline_mode<synchronous>, transform_indices = @transform_3, window_bounds = array<i64: 1, 64>}, {pipeline_mode = #tpu.pipeline_mode<synchronous>, transform_indices = @transform_4, window_bounds = array<i64: 64, 128>}, {pipeline_mode = #tpu.pipeline_mode<synchronous>, transform_indices = @transform_5, window_bounds = array<i64: 64, 128>}, {pipeline_mode = #tpu.pipeline_mode<synchronous>, transform_indices = @transform_6, window_bounds = array<i64: 1, 128>}, {pipeline_mode = #tpu.pipeline_mode<synchronous>, transform_indices = @transform_7, window_bounds = array<i64: 16, 128>}, {pipeline_mode = #tpu.pipeline_mode<synchronous>, transform_indices = @transform_8, window_bounds = array<i64: 16, 128>}]} {
    %c0 = arith.constant 0 : index
    %c0_0 = arith.constant 0 : index
    %0 = vector.load %arg1[%c0, %c0_0] : memref<16x16xf32, #tpu.memory_space<vmem>>, vector<16x16xf32>
    %c0_1 = arith.constant 0 : index
    %c0_2 = arith.constant 0 : index
    %1 = vector.load %arg2[%c0_1, %c0_2] : memref<16x16xf32, #tpu.memory_space<vmem>>, vector<16x16xf32>
    %c0_3 = arith.constant 0 : index
    %c0_4 = arith.constant 0 : index
    %c0_5 = arith.constant 0 : index
    %2 = vector.load %arg3[%c0_3, %c0_4, %c0_5] : memref<3x16x64xf32, #tpu.memory_space<vmem>>, vector<1x16x64xf32>
    %3 = vector.shape_cast %2 : vector<1x16x64xf32> to vector<16x64xf32>
    %cst = arith.constant dense<0.000000e+00> : vector<16x64xf32>
    %4 = tpu.matmul %1, %3, %cst {dimension_numbers = #tpu.dot_dimension_numbers<[1], [0], [0], [1], [0, 0, 1, 1], [], []>} : vector<16x16xf32>, vector<16x64xf32>, vector<16x64xf32> -> vector<16x64xf32>
    %cst_6 = arith.constant dense<0.000000e+00> : vector<16x16xf32>
    %5 = tpu.matmul %0, %1, %cst_6 {dimension_numbers = #tpu.dot_dimension_numbers<[1], [0], [0], [1], [0, 0, 1, 1], [], []>} : vector<16x16xf32>, vector<16x16xf32>, vector<16x16xf32> -> vector<16x16xf32>
    %c1 = arith.constant 1 : index
    %c0_7 = arith.constant 0 : index
    %c0_8 = arith.constant 0 : index
    %6 = vector.load %arg3[%c1, %c0_7, %c0_8] : memref<3x16x64xf32, #tpu.memory_space<vmem>>, vector<1x16x64xf32>
    %7 = vector.shape_cast %6 : vector<1x16x64xf32> to vector<16x64xf32>
    %cst_9 = arith.constant dense<0.000000e+00> : vector<16x64xf32>
    %8 = tpu.matmul %5, %7, %cst_9 {dimension_numbers = #tpu.dot_dimension_numbers<[1], [0], [0], [1], [0, 0, 1, 1], [], []>} : vector<16x16xf32>, vector<16x64xf32>, vector<16x64xf32> -> vector<16x64xf32>
    %9 = arith.addf %4, %8 : vector<16x64xf32>
    %cst_10 = arith.constant dense<0.000000e+00> : vector<16x16xf32>
    %10 = tpu.matmul %0, %5, %cst_10 {dimension_numbers = #tpu.dot_dimension_numbers<[1], [0], [0], [1], [0, 0, 1, 1], [], []>} : vector<16x16xf32>, vector<16x16xf32>, vector<16x16xf32> -> vector<16x16xf32>
    %cst_11 = arith.constant 2.000000e+00 : f32
    %11 = vector.broadcast %cst_11 : f32 to vector<16x16xf32>
    %12 = arith.mulf %11, %10 : vector<16x16xf32>
    %13 = arith.subf %12, %1 : vector<16x16xf32>
    %c2 = arith.constant 2 : index
    %c0_12 = arith.constant 0 : index
    %c0_13 = arith.constant 0 : index
    %14 = vector.load %arg3[%c2, %c0_12, %c0_13] : memref<3x16x64xf32, #tpu.memory_space<vmem>>, vector<1x16x64xf32>
    %15 = vector.shape_cast %14 : vector<1x16x64xf32> to vector<16x64xf32>
    %cst_14 = arith.constant dense<0.000000e+00> : vector<16x64xf32>
    %16 = tpu.matmul %13, %15, %cst_14 {dimension_numbers = #tpu.dot_dimension_numbers<[1], [0], [0], [1], [0, 0, 1, 1], [], []>} : vector<16x16xf32>, vector<16x64xf32>, vector<16x64xf32> -> vector<16x64xf32>
    %17 = arith.addf %9, %16 : vector<16x64xf32>
    %c0_15 = arith.constant 0 : index
    %c0_16 = arith.constant 0 : index
    %18 = vector.load %arg4[%c0_15, %c0_16] : memref<1x64xf32, #tpu.memory_space<vmem>>, vector<1x64xf32>
    %19 = vector.broadcast %18 : vector<1x64xf32> to vector<16x64xf32>
    %20 = arith.addf %17, %19 : vector<16x64xf32>
    %cst_17 = arith.constant 0.000000e+00 : f32
    %21 = vector.broadcast %cst_17 : f32 to vector<16x64xf32>
    %22 = arith.maximumf %20, %21 : vector<16x64xf32>
    %c0_18 = arith.constant 0 : index
    %c0_19 = arith.constant 0 : index
    %23 = vector.load %arg5[%c0_18, %c0_19] : memref<64x128xf32, #tpu.memory_space<vmem>>, vector<64x128xf32>
    %cst_20 = arith.constant dense<0.000000e+00> : vector<16x128xf32>
    %24 = tpu.matmul %22, %23, %cst_20 {dimension_numbers = #tpu.dot_dimension_numbers<[1], [0], [0], [1], [0, 0, 1, 1], [], []>} : vector<16x64xf32>, vector<64x128xf32>, vector<16x128xf32> -> vector<16x128xf32>
    %c0_21 = arith.constant 0 : index
    %c0_22 = arith.constant 0 : index
    %25 = vector.load %arg7[%c0_21, %c0_22] : memref<1x128xf32, #tpu.memory_space<vmem>>, vector<1x128xf32>
    %26 = vector.broadcast %25 : vector<1x128xf32> to vector<16x128xf32>
    %27 = arith.addf %24, %26 : vector<16x128xf32>
    %c0_23 = arith.constant 0 : index
    %c0_24 = arith.constant 0 : index
    %28 = vector.load %arg8[%c0_23, %c0_24] : memref<16x128xf32, #tpu.memory_space<vmem>>, vector<16x128xf32>
    tpu.vector_store %arg8[%c0_23, %c0_24], %27 {strides = array<i32>} : memref<16x128xf32, #tpu.memory_space<vmem>>, vector<16x128xf32>,
    %c0_25 = arith.constant 0 : index
    %c0_26 = arith.constant 0 : index
    %29 = vector.load %arg6[%c0_25, %c0_26] : memref<64x128xf32, #tpu.memory_space<vmem>>, vector<64x128xf32>
    %cst_27 = arith.constant dense<0.000000e+00> : vector<16x128xf32>
    %30 = tpu.matmul %22, %29, %cst_27 {dimension_numbers = #tpu.dot_dimension_numbers<[1], [0], [0], [1], [0, 0, 1, 1], [], []>} : vector<16x64xf32>, vector<64x128xf32>, vector<16x128xf32> -> vector<16x128xf32>
    %c0_28 = arith.constant 0 : index
    %c0_29 = arith.constant 0 : index
    %31 = vector.load %arg9[%c0_28, %c0_29] : memref<16x128xf32, #tpu.memory_space<vmem>>, vector<16x128xf32>
    tpu.vector_store %arg9[%c0_28, %c0_29], %30 {strides = array<i32>} : memref<16x128xf32, #tpu.memory_space<vmem>>, vector<16x128xf32>,
    return
  }
  func.func @transform_0(%arg0: i32) -> (i32, i32) {
    %c0_i32 = arith.constant 0 : i32
    %c0_i32_0 = arith.constant 0 : i32
    %c0_i32_1 = arith.constant 0 : i32
    return %c0_i32, %c0_i32_0 : i32, i32
  }
  func.func @transform_1(%arg0: i32) -> (i32, i32) {
    %c0_i32 = arith.constant 0 : i32
    %c0_i32_0 = arith.constant 0 : i32
    %c0_i32_1 = arith.constant 0 : i32
    return %c0_i32, %c0_i32_0 : i32, i32
  }
  func.func @transform_2(%arg0: i32) -> (i32, i32, i32) {
    %c0_i32 = arith.constant 0 : i32
    %c0_i32_0 = arith.constant 0 : i32
    %c0_i32_1 = arith.constant 0 : i32
    %c0_i32_2 = arith.constant 0 : i32
    return %c0_i32, %c0_i32_0, %c0_i32_1 : i32, i32, i32
  }
  func.func @transform_3(%arg0: i32) -> (i32, i32) {
    %c0_i32 = arith.constant 0 : i32
    %c0_i32_0 = arith.constant 0 : i32
    %c0_i32_1 = arith.constant 0 : i32
    return %c0_i32, %c0_i32_0 : i32, i32
  }
  func.func @transform_4(%arg0: i32) -> (i32, i32) {
    %c0_i32 = arith.constant 0 : i32
    %c0_i32_0 = arith.constant 0 : i32
    %c0_i32_1 = arith.constant 0 : i32
    return %c0_i32, %c0_i32_0 : i32, i32
  }
  func.func @transform_5(%arg0: i32) -> (i32, i32) {
    %c0_i32 = arith.constant 0 : i32
    %c0_i32_0 = arith.constant 0 : i32
    %c0_i32_1 = arith.constant 0 : i32
    return %c0_i32, %c0_i32_0 : i32, i32
  }
  func.func @transform_6(%arg0: i32) -> (i32, i32) {
    %c0_i32 = arith.constant 0 : i32
    %c0_i32_0 = arith.constant 0 : i32
    %c0_i32_1 = arith.constant 0 : i32
    return %c0_i32, %c0_i32_0 : i32, i32
  }
  func.func @transform_7(%arg0: i32) -> (i32, i32) {
    %c0_i32 = arith.constant 0 : i32
    %c0_i32_0 = arith.constant 0 : i32
    %c0_i32_1 = arith.constant 0 : i32
    return %c0_i32, %c0_i32_0 : i32, i32
  }
  func.func @transform_8(%arg0: i32) -> (i32, i32) {
    %c0_i32 = arith.constant 0 : i32
    %c0_i32_0 = arith.constant 0 : i32
    %c0_i32_1 = arith.constant 0 : i32
    return %c0_i32, %c0_i32_0 : i32, i32
  }
}

</mosaic_0001>

<llo_original>
// kernel: tpu_custom_call.1
$region0: #{tpu_custom_call.1}
  #allocation0 [shape = 'u32[]', space=smem, size = 0x4, offset = 0x4, fixed_abs, tag = 'smem constant byte address 0x4 - core index']
  #allocation1 [shape = 'u32[144,128]{1,0:T(1,128)}', space=vmem, size = 0x12000, scoped, tag = 'internal scratch']
  %s0 = inlined_call_operand.hbm [shape: f32[16,16], index: 0, kind: input, shape index: {}]
  %s1 = inlined_call_operand.hbm [shape: f32[16,16], index: 1, kind: input, shape index: {}]
  %s2 = inlined_call_operand.hbm [shape: f32[3,16,64], index: 2, kind: input, shape index: {}]
  %s3 = inlined_call_operand.vmem [shape: f32[1,64], index: 3, kind: input, shape index: {}]
  %s4 = inlined_call_operand.hbm [shape: f32[64,128], index: 4, kind: input, shape index: {}]
  %s5 = inlined_call_operand.hbm [shape: f32[64,128], index: 5, kind: input, shape index: {}]
  %s6 = inlined_call_operand.vmem [shape: f32[1,128], index: 6, kind: input, shape index: {}]
  %s7 = inlined_call_operand.hbm [shape: f32[16,128], index: 7, kind: output, shape index: {0}]
  %s8 = inlined_call_operand.hbm [shape: f32[16,128], index: 8, kind: output, shape index: {1}]
  %9 = xla_tuple %s7, %s8
  %s10 = sld [smem:[#allocation0]]
  $region66: #{tpu_custom_call.1} parent=0
    _
  %s12 = ssub.s32 1, %s10
  %s13 = scalar_select 0, %s12, %s10
  $region1: #{tpu_custom_call.1} parent=0
    #allocation2 [shape = 'u8[8192]{0}', space=vmem, size = 0x2000, scoped, tag = 'input window, operand 0, single buffered']
    #allocation3 [shape = 's32[1]{0}', space=sflag, size = 0x4, scoped, tag = 'scoped memory for tpu_custom_call.1']
    #allocation4 [shape = 's32[1]{0}', space=sflag, size = 0x4, scoped, tag = 'scoped memory for tpu_custom_call.1']
    #allocation5 [shape = 'u8[8192]{0}', space=vmem, size = 0x2000, scoped, tag = 'input window, operand 1, single buffered']
    #allocation6 [shape = 's32[1]{0}', space=sflag, size = 0x4, scoped, tag = 'scoped memory for tpu_custom_call.1']
    #allocation7 [shape = 'u8[24576]{0}', space=vmem, size = 0x6000, scoped, tag = 'input window, operand 2, single buffered']
    #allocation8 [shape = 'u8[32768]{0}', space=vmem, size = 0x8000, scoped, tag = 'input window, operand 4, single buffered']
    #allocation9 [shape = 's32[1]{0}', space=sflag, size = 0x4, scoped, tag = 'scoped memory for tpu_custom_call.1']
    #allocation10 [shape = 'u8[32768]{0}', space=vmem, size = 0x8000, scoped, tag = 'input window, operand 5, single buffered']
    #allocation11 [shape = 'u8[8192]{0}', space=vmem, size = 0x2000, scoped, tag = 'output window, operand 0, single buffered']
    #allocation12 [shape = 'u8[8192]{0}', space=vmem, size = 0x2000, scoped, tag = 'output window, operand 1, single buffered']
    #allocation13 [shape = 's32[1]{0}', space=sflag, size = 0x4, scoped, tag = 'scoped memory for tpu_custom_call.1']
    %14 = vsyncpa [#allocation3], 0
    %15 = vsyncpa [#allocation6], 0
    %16 = vsyncpa [#allocation9], 0
    %17 = vsyncpa [#allocation4], 0
    %18 = vsyncpa [#allocation13], 0
    // Predicated region
    $region2: #{tpu_custom_call.1} parent=1 // pred_check
      _
    $region3: #{tpu_custom_call.1} parent=1 // pred_check_branch
      %20 = sbr.rel (0) target = $region5
    $region4: #{tpu_custom_call.1} parent=1 // pred_region
      %s22 = ssub.s32 256, 256
      %23 = vsyncadd [#allocation3], %s22
      %s24 = sshll.u32 [#allocation2], 4
      %s25 = int_to_ptr.vmem [resolvable:$true] %s24
      %30 = dma.hbm_to_vmem [thread:$0]  %s0, 256, %s25, [#allocation3], 128, 128, 8
    $region5: #{tpu_custom_call.1} parent=1 // pred_fallthru
      _
    // Predicated region
    $region6: #{tpu_custom_call.1} parent=1 // pred_check
      _
    $region7: #{tpu_custom_call.1} parent=1 // pred_check_branch
      %32 = sbr.rel (0) target = $region9
    $region8: #{tpu_custom_call.1} parent=1 // pred_region
      %s34 = ssub.s32 256, 256
      %35 = vsyncadd [#allocation6], %s34
      %s36 = sshll.u32 [#allocation5], 4
      %s37 = int_to_ptr.vmem [resolvable:$true] %s36
      %42 = dma.hbm_to_vmem [thread:$0]  %s1, 256, %s37, [#allocation6], 128, 128, 8
    $region9: #{tpu_custom_call.1} parent=1 // pred_fallthru
      _
    // Predicated region
    $region10: #{tpu_custom_call.1} parent=1 // pred_check
      _
    $region11: #{tpu_custom_call.1} parent=1 // pred_check_branch
      %44 = sbr.rel (0) target = $region13
    $region12: #{tpu_custom_call.1} parent=1 // pred_region
      %s46 = ssub.s32 768, 768
      %47 = vsyncadd [#allocation6], %s46
      %s48 = sshll.u32 [#allocation7], 4
      %s49 = int_to_ptr.vmem [resolvable:$true] %s48
      %54 = dma.hbm_to_vmem [thread:$0]  %s2, 768, %s49, [#allocation6], 128, 128, 8
    $region13: #{tpu_custom_call.1} parent=1 // pred_fallthru
      _
    // Predicated region
    $region14: #{tpu_custom_call.1} parent=1 // pred_check
      _
    $region15: #{tpu_custom_call.1} parent=1 // pred_check_branch
      %56 = sbr.rel (0) target = $region17
    $region16: #{tpu_custom_call.1} parent=1 // pred_region
      _
    $region17: #{tpu_custom_call.1} parent=1 // pred_fallthru
      _
    // Predicated region
    $region18: #{tpu_custom_call.1} parent=1 // pred_check
      _
    $region19: #{tpu_custom_call.1} parent=1 // pred_check_branch
      %58 = sbr.rel (0) target = $region21
    $region20: #{tpu_custom_call.1} parent=1 // pred_region
      %s60 = ssub.s32 1024, 1024
      %61 = vsyncadd [#allocation9], %s60
      %s62 = sshll.u32 [#allocation8], 4
      %s63 = int_to_ptr.vmem [resolvable:$true] %s62
      %68 = dma.hbm_to_vmem [thread:$0]  %s4, 1024, %s63, [#allocation9], 128, 128, 8
    $region21: #{tpu_custom_call.1} parent=1 // pred_fallthru
      _
    // Predicated region
    $region22: #{tpu_custom_call.1} parent=1 // pred_check
      _
    $region23: #{tpu_custom_call.1} parent=1 // pred_check_branch
      %70 = sbr.rel (0) target = $region25
    $region24: #{tpu_custom_call.1} parent=1 // pred_region
      %s72 = ssub.s32 1024, 1024
      %73 = vsyncadd [#allocation9], %s72
      %s74 = sshll.u32 [#allocation10], 4
      %s75 = int_to_ptr.vmem [resolvable:$true] %s74
      %80 = dma.hbm_to_vmem [thread:$0]  %s5, 1024, %s75, [#allocation9], 128, 128, 8
    $region25: #{tpu_custom_call.1} parent=1 // pred_fallthru
      _
    // Predicated region
    $region26: #{tpu_custom_call.1} parent=1 // pred_check
      _
    $region27: #{tpu_custom_call.1} parent=1 // pred_check_branch
      %82 = sbr.rel (0) target = $region29
    $region28: #{tpu_custom_call.1} parent=1 // pred_region
      _
    $region29: #{tpu_custom_call.1} parent=1 // pred_fallthru
      _
    // Predicated region
    $region30: #{tpu_custom_call.1} parent=1 // pred_check
      _
    $region31: #{tpu_custom_call.1} parent=1 // pred_check_branch
      %84 = sbr.rel (0) target = $region33
    $region32: #{tpu_custom_call.1} parent=1 // pred_region
      %85 = dma.done [#allocation3], 256
    $region33: #{tpu_custom_call.1} parent=1 // pred_fallthru
      _
    // Predicated region
    $region34: #{tpu_custom_call.1} parent=1 // pred_check
      _
    $region35: #{tpu_custom_call.1} parent=1 // pred_check_branch
      %87 = sbr.rel (0) target = $region37
    $region36: #{tpu_custom_call.1} parent=1 // pred_region
      %88 = dma.done [#allocation6], 256
    $region37: #{tpu_custom_call.1} parent=1 // pred_fallthru
      _
    // Predicated region
    $region38: #{tpu_custom_call.1} parent=1 // pred_check
      _
    $region39: #{tpu_custom_call.1} parent=1 // pred_check_branch
      %90 = sbr.rel (0) target = $region41
    $region40: #{tpu_custom_call.1} parent=1 // pred_region
      %91 = dma.done [#allocation6], 768
    $region41: #{tpu_custom_call.1} parent=1 // pred_fallthru
      _
    // Predicated region
    $region42: #{tpu_custom_call.1} parent=1 // pred_check
      _
    $region43: #{tpu_custom_call.1} parent=1 // pred_check_branch
      %93 = sbr.rel (0) target = $region45
    $region44: #{tpu_custom_call.1} parent=1 // pred_region
      %94 = dma.done [#allocation9], 1024
    $region45: #{tpu_custom_call.1} parent=1 // pred_fallthru
      _
    // Predicated region
    $region46: #{tpu_custom_call.1} parent=1 // pred_check
      _
    $region47: #{tpu_custom_call.1} parent=1 // pred_check_branch
      %96 = sbr.rel (0) target = $region49
    $region48: #{tpu_custom_call.1} parent=1 // pred_region
      %97 = dma.done [#allocation9], 1024
    $region49: #{tpu_custom_call.1} parent=1 // pred_fallthru
      _
    %v98 = vld [vmem:[#allocation2] sm:$0xff]
    %v99 = vld [vmem:[#allocation2 + $0x8] sm:$0xff]
    %v100 = vld [vmem:[#allocation5] sm:$0xff]
    %v101 = vld [vmem:[#allocation5 + $0x8] sm:$0xff]
    %v102 = vld [vmem:[#allocation7] sm:$0xff]
    %v103 = vld [vmem:[#allocation7 + $0x8] sm:$0xff]
    %vm104 = vcmask 130048
    %v106 = vsel %vm104, %v98, 0
    %v109 = vsel %vm104, %v99, 0
    %111 = vmatprep.subr.mxu0 0.0
    %112 = vmatpush1.msra.mxu0 0.0
    %113 = vmatprep.subr.mxu0 0.0
    %114 = vmatpush1.msra.mxu0 0.0
    %115 = vmatprep.subr.mxu0 0.0
    %116 = vmatpush1.msra.mxu0 0.0
    %117 = vmatprep.subr.mxu0 0.0
    %118 = vmatpush1.msra.mxu0 0.0
    %119 = vmatprep.subr.mxu0 0.0
    %120 = vmatpush1.msra.mxu0 0.0
    %121 = vmatprep.subr.mxu0 0.0
    %122 = vmatpush1.msra.mxu0 0.0
    %123 = vmatprep.subr.mxu0 0.0
    %124 = vmatpush1.msra.mxu0 0.0
    %125 = vmatprep.subr.mxu0 0.0
    %126 = vmatpush1.msra.mxu0 0.0
    %127 = vmatprep.subr.mxu0 0.0
    %128 = vmatpush1.msra.mxu0 0.0
    %129 = vmatprep.subr.mxu0 0.0
    %130 = vmatpush1.msra.mxu0 0.0
    %131 = vmatprep.subr.mxu0 0.0
    %132 = vmatpush1.msra.mxu0 0.0
    %133 = vmatprep.subr.mxu0 0.0
    %134 = vmatpush1.msra.mxu0 0.0
    %135 = vmatprep.subr.mxu0 0.0
    %136 = vmatpush1.msra.mxu0 0.0
    %137 = vmatprep.subr.mxu0 0.0
    %138 = vmatpush1.msra.mxu0 0.0
    %139 = vmatprep.subr.mxu0 0.0
    %140 = vmatpush1.msra.mxu0 %v101
    %141 = vmatprep.subr.mxu0 0.0
    %142 = vmatpush1.msra.mxu0 %v100
    %143 = vmatprep.subr.mxu0 0.0
    %144 = vmatpush2.msra.mxu0 0.0
    %145 = vmatprep.subr.mxu0 0.0
    %146 = vmatpush2.msra.mxu0 0.0
    %147 = vmatprep.subr.mxu0 0.0
    %148 = vmatpush2.msra.mxu0 0.0
    %149 = vmatprep.subr.mxu0 0.0
    %150 = vmatpush2.msra.mxu0 0.0
    %151 = vmatprep.subr.mxu0 0.0
    %152 = vmatpush2.msra.mxu0 0.0
    %153 = vmatprep.subr.mxu0 0.0
    %154 = vmatpush2.msra.mxu0 0.0
    %155 = vmatprep.subr.mxu0 0.0
    %156 = vmatpush2.msra.mxu0 0.0
    %157 = vmatprep.subr.mxu0 0.0
    %158 = vmatpush2.msra.mxu0 0.0
    %159 = vmatprep.subr.mxu0 0.0
    %160 = vmatpush2.msra.mxu0 0.0
    %161 = vmatprep.subr.mxu0 0.0
    %162 = vmatpush2.msra.mxu0 0.0
    %163 = vmatprep.subr.mxu0 0.0
    %164 = vmatpush2.msra.mxu0 0.0
    %165 = vmatprep.subr.mxu0 0.0
    %166 = vmatpush2.msra.mxu0 0.0
    %167 = vmatprep.subr.mxu0 0.0
    %168 = vmatpush2.msra.mxu0 0.0
    %169 = vmatprep.subr.mxu0 0.0
    %170 = vmatpush2.msra.mxu0 0.0
    %171 = vmatprep.subr.mxu0 0.0
    %172 = vmatpush2.msra.mxu0 0.0
    %173 = vmatprep.subr.mxu0 0.0
    %174 = vmatpush2.msra.mxu0 0.0
    %175 = vmatprep.mubr.f32.mxu0 0.0
    %176 = vmatmul.mubr.f32.gmra.mxu0 %v106
    %v177 = vpop.f32.mrf.mxu0
    %v178 = vadd.f32 0.0, %v177
    %v179 = vpop.f32.mrf.mxu0
    %180 = vmatprep.mubr.f32.mxu0 0.0
    %181 = vmatmul.mubr.f32.gmra.mxu0 %v109
    %v182 = vpop.f32.mrf.mxu0
    %v183 = vadd.f32 0.0, %v182
    %v184 = vpop.f32.mrf.mxu0
    %185 = vdwg.mxu0
    %s186 = scalar_lea.vmem [#allocation7], 16
    %v187 = vld [vmem:[%s186] sm:$0xff]
    %v188 = vld [vmem:[%s186 + $0x8] sm:$0xff]
    %v190 = vsel %vm104, %v178, 0
    %v193 = vsel %vm104, %v183, 0
    %195 = vmatprep.subr.mxu0 0.0
    %196 = vmatpush1.msra.mxu0 0.0
    %197 = vmatprep.subr.mxu0 0.0
    %198 = vmatpush1.msra.mxu0 0.0
    %199 = vmatprep.subr.mxu0 0.0
    %200 = vmatpush1.msra.mxu0 0.0
    %201 = vmatprep.subr.mxu0 0.0
    %202 = vmatpush1.msra.mxu0 0.0
    %203 = vmatprep.subr.mxu0 0.0
    %204 = vmatpush1.msra.mxu0 0.0
    %205 = vmatprep.subr.mxu0 0.0
    %206 = vmatpush1.msra.mxu0 0.0
    %207 = vmatprep.subr.mxu0 0.0
    %208 = vmatpush1.msra.mxu0 0.0
    %209 = vmatprep.subr.mxu0 0.0
    %210 = vmatpush1.msra.mxu0 0.0
    %211 = vmatprep.subr.mxu0 0.0
    %212 = vmatpush1.msra.mxu0 0.0
    %213 = vmatprep.subr.mxu0 0.0
    %214 = vmatpush1.msra.mxu0 0.0
    %215 = vmatprep.subr.mxu0 0.0
    %216 = vmatpush1.msra.mxu0 0.0
    %217 = vmatprep.subr.mxu0 0.0
    %218 = vmatpush1.msra.mxu0 0.0
    %219 = vmatprep.subr.mxu0 0.0
    %220 = vmatpush1.msra.mxu0 0.0
    %221 = vmatprep.subr.mxu0 0.0
    %222 = vmatpush1.msra.mxu0 0.0
    %223 = vmatprep.subr.mxu0 0.0
    %224 = vmatpush1.msra.mxu0 %v188
    %225 = vmatprep.subr.mxu0 0.0
    %226 = vmatpush1.msra.mxu0 %v187
    %227 = vmatprep.subr.mxu0 0.0
    %228 = vmatpush2.msra.mxu0 0.0
    %229 = vmatprep.subr.mxu0 0.0
    %230 = vmatpush2.msra.mxu0 0.0
    %231 = vmatprep.subr.mxu0 0.0
    %232 = vmatpush2.msra.mxu0 0.0
    %233 = vmatprep.subr.mxu0 0.0
    %234 = vmatpush2.msra.mxu0 0.0
    %235 = vmatprep.subr.mxu0 0.0
    %236 = vmatpush2.msra.mxu0 0.0
    %237 = vmatprep.subr.mxu0 0.0
    %238 = vmatpush2.msra.mxu0 0.0
    %239 = vmatprep.subr.mxu0 0.0
    %240 = vmatpush2.msra.mxu0 0.0
    %241 = vmatprep.subr.mxu0 0.0
    %242 = vmatpush2.msra.mxu0 0.0
    %243 = vmatprep.subr.mxu0 0.0
    %244 = vmatpush2.msra.mxu0 0.0
    %245 = vmatprep.subr.mxu0 0.0
    %246 = vmatpush2.msra.mxu0 0.0
    %247 = vmatprep.subr.mxu0 0.0
    %248 = vmatpush2.msra.mxu0 0.0
    %249 = vmatprep.subr.mxu0 0.0
    %250 = vmatpush2.msra.mxu0 0.0
    %251 = vmatprep.subr.mxu0 0.0
    %252 = vmatpush2.msra.mxu0 0.0
    %253 = vmatprep.subr.mxu0 0.0
    %254 = vmatpush2.msra.mxu0 0.0
    %255 = vmatprep.subr.mxu0 0.0
    %256 = vmatpush2.msra.mxu0 0.0
    %257 = vmatprep.subr.mxu0 0.0
    %258 = vmatpush2.msra.mxu0 0.0
    %259 = vmatprep.mubr.f32.mxu0 0.0
    %260 = vmatmul.mubr.f32.gmra.mxu0 %v190
    %v261 = vpop.f32.mrf.mxu0
    %v262 = vadd.f32 0.0, %v261
    %v263 = vpop.f32.mrf.mxu0
    %264 = vmatprep.mubr.f32.mxu0 0.0
    %265 = vmatmul.mubr.f32.gmra.mxu0 %v193
    %v266 = vpop.f32.mrf.mxu0
    %v267 = vadd.f32 0.0, %v266
    %v268 = vpop.f32.mrf.mxu0
    %269 = vdwg.mxu0
    %v271 = vsel %vm104, %v100, 0
    %v274 = vsel %vm104, %v101, 0
    %276 = vmatprep.subr.mxu0 0.0
    %277 = vmatpush1.msra.mxu0 0.0
    %278 = vmatprep.subr.mxu0 0.0
    %279 = vmatpush1.msra.mxu0 0.0
    %280 = vmatprep.subr.mxu0 0.0
    %281 = vmatpush1.msra.mxu0 0.0
    %282 = vmatprep.subr.mxu0 0.0
    %283 = vmatpush1.msra.mxu0 0.0
    %284 = vmatprep.subr.mxu0 0.0
    %285 = vmatpush1.msra.mxu0 0.0
    %286 = vmatprep.subr.mxu0 0.0
    %287 = vmatpush1.msra.mxu0 0.0
    %288 = vmatprep.subr.mxu0 0.0
    %289 = vmatpush1.msra.mxu0 0.0
    %290 = vmatprep.subr.mxu0 0.0
    %291 = vmatpush1.msra.mxu0 0.0
    %292 = vmatprep.subr.mxu0 0.0
    %293 = vmatpush1.msra.mxu0 0.0
    %294 = vmatprep.subr.mxu0 0.0
    %295 = vmatpush1.msra.mxu0 0.0
    %296 = vmatprep.subr.mxu0 0.0
    %297 = vmatpush1.msra.mxu0 0.0
    %298 = vmatprep.subr.mxu0 0.0
    %299 = vmatpush1.msra.mxu0 0.0
    %300 = vmatprep.subr.mxu0 0.0
    %301 = vmatpush1.msra.mxu0 0.0
    %302 = vmatprep.subr.mxu0 0.0
    %303 = vmatpush1.msra.mxu0 0.0
    %304 = vmatprep.subr.mxu0 0.0
    %305 = vmatpush1.msra.mxu0 %v103
    %306 = vmatprep.subr.mxu0 0.0
    %307 = vmatpush1.msra.mxu0 %v102
    %308 = vmatprep.subr.mxu0 0.0
    %309 = vmatpush2.msra.mxu0 0.0
    %310 = vmatprep.subr.mxu0 0.0
    %311 = vmatpush2.msra.mxu0 0.0
    %312 = vmatprep.subr.mxu0 0.0
    %313 = vmatpush2.msra.mxu0 0.0
    %314 = vmatprep.subr.mxu0 0.0
    %315 = vmatpush2.msra.mxu0 0.0
    %316 = vmatprep.subr.mxu0 0.0
    %317 = vmatpush2.msra.mxu0 0.0
    %318 = vmatprep.subr.mxu0 0.0
    %319 = vmatpush2.msra.mxu0 0.0
    %320 = vmatprep.subr.mxu0 0.0
    %321 = vmatpush2.msra.mxu0 0.0
    %322 = vmatprep.subr.mxu0 0.0
    %323 = vmatpush2.msra.mxu0 0.0
    %324 = vmatprep.subr.mxu0 0.0
    %325 = vmatpush2.msra.mxu0 0.0
    %326 = vmatprep.subr.mxu0 0.0
    %327 = vmatpush2.msra.mxu0 0.0
    %328 = vmatprep.subr.mxu0 0.0
    %329 = vmatpush2.msra.mxu0 0.0
    %330 = vmatprep.subr.mxu0 0.0
    %331 = vmatpush2.msra.mxu0 0.0
    %332 = vmatprep.subr.mxu0 0.0
    %333 = vmatpush2.msra.mxu0 0.0
    %334 = vmatprep.subr.mxu0 0.0
    %335 = vmatpush2.msra.mxu0 0.0
    %336 = vmatprep.subr.mxu0 0.0
    %337 = vmatpush2.msra.mxu0 0.0
    %338 = vmatprep.subr.mxu0 0.0
    %339 = vmatpush2.msra.mxu0 0.0
    %340 = vmatprep.mubr.f32.mxu0 0.0
    %341 = vmatmul.mubr.f32.gmra.mxu0 %v271
    %v342 = vpop.f32.mrf.mxu0
    %v343 = vadd.f32 %v262, %v342
    %v344 = vpop.f32.mrf.mxu0
    %345 = vmatprep.mubr.f32.mxu0 0.0
    %346 = vmatmul.mubr.f32.gmra.mxu0 %v274
    %v347 = vpop.f32.mrf.mxu0
    %v348 = vadd.f32 %v267, %v347
    %v349 = vpop.f32.mrf.mxu0
    %350 = vdwg.mxu0
    %351 = vmatprep.subr.mxu0 0.0
    %352 = vmatpush1.msra.mxu0 0.0
    %353 = vmatprep.subr.mxu0 0.0
    %354 = vmatpush1.msra.mxu0 0.0
    %355 = vmatprep.subr.mxu0 0.0
    %356 = vmatpush1.msra.mxu0 0.0
    %357 = vmatprep.subr.mxu0 0.0
    %358 = vmatpush1.msra.mxu0 0.0
    %359 = vmatprep.subr.mxu0 0.0
    %360 = vmatpush1.msra.mxu0 0.0
    %361 = vmatprep.subr.mxu0 0.0
    %362 = vmatpush1.msra.mxu0 0.0
    %363 = vmatprep.subr.mxu0 0.0
    %364 = vmatpush1.msra.mxu0 0.0
    %365 = vmatprep.subr.mxu0 0.0
    %366 = vmatpush1.msra.mxu0 0.0
    %367 = vmatprep.subr.mxu0 0.0
    %368 = vmatpush1.msra.mxu0 0.0
    %369 = vmatprep.subr.mxu0 0.0
    %370 = vmatpush1.msra.mxu0 0.0
    %371 = vmatprep.subr.mxu0 0.0
    %372 = vmatpush1.msra.mxu0 0.0
    %373 = vmatprep.subr.mxu0 0.0
    %374 = vmatpush1.msra.mxu0 0.0
    %375 = vmatprep.subr.mxu0 0.0
    %376 = vmatpush1.msra.mxu0 0.0
    %377 = vmatprep.subr.mxu0 0.0
    %378 = vmatpush1.msra.mxu0 0.0
    %379 = vmatprep.subr.mxu0 0.0
    %380 = vmatpush1.msra.mxu0 %v183
    %381 = vmatprep.subr.mxu0 0.0
    %382 = vmatpush1.msra.mxu0 %v178
    %383 = vmatprep.subr.mxu0 0.0
    %384 = vmatpush2.msra.mxu0 0.0
    %385 = vmatprep.subr.mxu0 0.0
    %386 = vmatpush2.msra.mxu0 0.0
    %387 = vmatprep.subr.mxu0 0.0
    %388 = vmatpush2.msra.mxu0 0.0
    %389 = vmatprep.subr.mxu0 0.0
    %390 = vmatpush2.msra.mxu0 0.0
    %391 = vmatprep.subr.mxu0 0.0
    %392 = vmatpush2.msra.mxu0 0.0
    %393 = vmatprep.subr.mxu0 0.0
    %394 = vmatpush2.msra.mxu0 0.0
    %395 = vmatprep.subr.mxu0 0.0
    %396 = vmatpush2.msra.mxu0 0.0
    %397 = vmatprep.subr.mxu0 0.0
    %398 = vmatpush2.msra.mxu0 0.0
    %399 = vmatprep.subr.mxu0 0.0
    %400 = vmatpush2.msra.mxu0 0.0
    %401 = vmatprep.subr.mxu0 0.0
    %402 = vmatpush2.msra.mxu0 0.0
    %403 = vmatprep.subr.mxu0 0.0
    %404 = vmatpush2.msra.mxu0 0.0
    %405 = vmatprep.subr.mxu0 0.0
    %406 = vmatpush2.msra.mxu0 0.0
    %407 = vmatprep.subr.mxu0 0.0
    %408 = vmatpush2.msra.mxu0 0.0
    %409 = vmatprep.subr.mxu0 0.0
    %410 = vmatpush2.msra.mxu0 0.0
    %411 = vmatprep.subr.mxu0 0.0
    %412 = vmatpush2.msra.mxu0 0.0
    %413 = vmatprep.subr.mxu0 0.0
    %414 = vmatpush2.msra.mxu0 0.0
    %415 = vmatprep.mubr.f32.mxu0 0.0
    %416 = vmatmul.mubr.f32.gmra.mxu0 %v106
    %v417 = vpop.f32.mrf.mxu0
    %v418 = vadd.f32 0.0, %v417
    %v419 = vpop.f32.mrf.mxu0
    %420 = vmatprep.mubr.f32.mxu0 0.0
    %421 = vmatmul.mubr.f32.gmra.mxu0 %v109
    %v422 = vpop.f32.mrf.mxu0
    %v423 = vadd.f32 0.0, %v422
    %v424 = vpop.f32.mrf.mxu0
    %425 = vdwg.mxu0
    %v426 = vmul.f32 %v418, 2.0
    %v427 = vmul.f32 %v423, 2.0
    %v428 = vsub.f32 %v426, %v100
    %v429 = vsub.f32 %v427, %v101
    %s430 = scalar_lea.vmem [#allocation7], 32
    %v431 = vld [vmem:[%s430] sm:$0xff]
    %v432 = vld [vmem:[%s430 + $0x8] sm:$0xff]
    %v434 = vsel %vm104, %v428, 0
    %v437 = vsel %vm104, %v429, 0
    %439 = vmatprep.subr.mxu0 0.0
    %440 = vmatpush1.msra.mxu0 0.0
    %441 = vmatprep.subr.mxu0 0.0
    %442 = vmatpush1.msra.mxu0 0.0
    %443 = vmatprep.subr.mxu0 0.0
    %444 = vmatpush1.msra.mxu0 0.0
    %445 = vmatprep.subr.mxu0 0.0
    %446 = vmatpush1.msra.mxu0 0.0
    %447 = vmatprep.subr.mxu0 0.0
    %448 = vmatpush1.msra.mxu0 0.0
    %449 = vmatprep.subr.mxu0 0.0
    %450 = vmatpush1.msra.mxu0 0.0
    %451 = vmatprep.subr.mxu0 0.0
    %452 = vmatpush1.msra.mxu0 0.0
    %453 = vmatprep.subr.mxu0 0.0
    %454 = vmatpush1.msra.mxu0 0.0
    %455 = vmatprep.subr.mxu0 0.0
    %456 = vmatpush1.msra.mxu0 0.0
    %457 = vmatprep.subr.mxu0 0.0
    %458 = vmatpush1.msra.mxu0 0.0
    %459 = vmatprep.subr.mxu0 0.0
    %460 = vmatpush1.msra.mxu0 0.0
    %461 = vmatprep.subr.mxu0 0.0
    %462 = vmatpush1.msra.mxu0 0.0
    %463 = vmatprep.subr.mxu0 0.0
    %464 = vmatpush1.msra.mxu0 0.0
    %465 = vmatprep.subr.mxu0 0.0
    %466 = vmatpush1.msra.mxu0 0.0
    %467 = vmatprep.subr.mxu0 0.0
    %468 = vmatpush1.msra.mxu0 %v432
    %469 = vmatprep.subr.mxu0 0.0
    %470 = vmatpush1.msra.mxu0 %v431
    %471 = vmatprep.subr.mxu0 0.0
    %472 = vmatpush2.msra.mxu0 0.0
    %473 = vmatprep.subr.mxu0 0.0
    %474 = vmatpush2.msra.mxu0 0.0
    %475 = vmatprep.subr.mxu0 0.0
    %476 = vmatpush2.msra.mxu0 0.0
    %477 = vmatprep.subr.mxu0 0.0
    %478 = vmatpush2.msra.mxu0 0.0
    %479 = vmatprep.subr.mxu0 0.0
    %480 = vmatpush2.msra.mxu0 0.0
    %481 = vmatprep.subr.mxu0 0.0
    %482 = vmatpush2.msra.mxu0 0.0
    %483 = vmatprep.subr.mxu0 0.0
    %484 = vmatpush2.msra.mxu0 0.0
    %485 = vmatprep.subr.mxu0 0.0
    %486 = vmatpush2.msra.mxu0 0.0
    %487 = vmatprep.subr.mxu0 0.0
    %488 = vmatpush2.msra.mxu0 0.0
    %489 = vmatprep.subr.mxu0 0.0
    %490 = vmatpush2.msra.mxu0 0.0
    %491 = vmatprep.subr.mxu0 0.0
    %492 = vmatpush2.msra.mxu0 0.0
    %493 = vmatprep.subr.mxu0 0.0
    %494 = vmatpush2.msra.mxu0 0.0
    %495 = vmatprep.subr.mxu0 0.0
    %496 = vmatpush2.msra.mxu0 0.0
    %497 = vmatprep.subr.mxu0 0.0
    %498 = vmatpush2.msra.mxu0 0.0
    %499 = vmatprep.subr.mxu0 0.0
    %500 = vmatpush2.msra.mxu0 0.0
    %501 = vmatprep.subr.mxu0 0.0
    %502 = vmatpush2.msra.mxu0 0.0
    %503 = vmatprep.mubr.f32.mxu0 0.0
    %504 = vmatmul.mubr.f32.gmra.mxu0 %v434
    %v505 = vpop.f32.mrf.mxu0
    %v506 = vadd.f32 0.0, %v505
    %v507 = vpop.f32.mrf.mxu0
    %508 = vmatprep.mubr.f32.mxu0 0.0
    %509 = vmatmul.mubr.f32.gmra.mxu0 %v437
    %v510 = vpop.f32.mrf.mxu0
    %v511 = vadd.f32 0.0, %v510
    %v512 = vpop.f32.mrf.mxu0
    %513 = vdwg.mxu0
    %v514 = vadd.f32 %v343, %v506
    %v515 = vadd.f32 %v348, %v511
    %v516 = vld [vmem:[%s3] sm:$0x1]
    %v518 = vlaneseq
    %v519 = vshrl.u32 %v518, 7
    %v520 = vsub.s32 0, %v519
    %v521 = vrot.slane %v516, %v520
    %v523 = vadd.f32 %v514, %v521
    %v524 = vadd.f32 %v515, %v521
    %v525 = vmax.f32 %v523, 0.0
    %v526 = vmax.f32 %v524, 0.0
    %v527 = vld [vmem:[#allocation8] sm:$0xff]
    %v528 = vld [vmem:[#allocation8 + $0x8] sm:$0xff]
    %v529 = vld [vmem:[#allocation8 + $0x10] sm:$0xff]
    %v530 = vld [vmem:[#allocation8 + $0x18] sm:$0xff]
    %v531 = vld [vmem:[#allocation8 + $0x20] sm:$0xff]
    %v532 = vld [vmem:[#allocation8 + $0x28] sm:$0xff]
    %v533 = vld [vmem:[#allocation8 + $0x30] sm:$0xff]
    %v534 = vld [vmem:[#allocation8 + $0x38] sm:$0xff]
    %v535 = vld [vmem:[%s6] sm:$0x1]
    %v537 = vlaneseq
    %v538 = vshrl.u32 %v537, 7
    %v539 = vsub.s32 0, %v538
    %v540 = vrot.slane %v535, %v539
    %vm542 = vcmask 523264
    %v544 = vsel %vm542, %v525, 0
    %v547 = vsel %vm542, %v526, 0
    %549 = vmatprep.subr.mxu0 0.0
    %550 = vmatpush1.msra.mxu0 0.0
    %551 = vmatprep.subr.mxu0 0.0
    %552 = vmatpush1.msra.mxu0 0.0
    %553 = vmatprep.subr.mxu0 0.0
    %554 = vmatpush1.msra.mxu0 0.0
    %555 = vmatprep.subr.mxu0 0.0
    %556 = vmatpush1.msra.mxu0 0.0
    %557 = vmatprep.subr.mxu0 0.0
    %558 = vmatpush1.msra.mxu0 0.0
    %559 = vmatprep.subr.mxu0 0.0
    %560 = vmatpush1.msra.mxu0 0.0
    %561 = vmatprep.subr.mxu0 0.0
    %562 = vmatpush1.msra.mxu0 0.0
    %563 = vmatprep.subr.mxu0 0.0
    %564 = vmatpush1.msra.mxu0 0.0
    %565 = vmatprep.subr.mxu0 0.0
    %566 = vmatpush1.msra.mxu0 %v534
    %567 = vmatprep.subr.mxu0 0.0
    %568 = vmatpush1.msra.mxu0 %v533
    %569 = vmatprep.subr.mxu0 0.0
    %570 = vmatpush1.msra.mxu0 %v532
    %571 = vmatprep.subr.mxu0 0.0
    %572 = vmatpush1.msra.mxu0 %v531
    %573 = vmatprep.subr.mxu0 0.0
    %574 = vmatpush1.msra.mxu0 %v530
    %575 = vmatprep.subr.mxu0 0.0
    %576 = vmatpush1.msra.mxu0 %v529
    %577 = vmatprep.subr.mxu0 0.0
    %578 = vmatpush1.msra.mxu0 %v528
    %579 = vmatprep.subr.mxu0 0.0
    %580 = vmatpush1.msra.mxu0 %v527
    %581 = vmatprep.subr.mxu0 0.0
    %582 = vmatpush2.msra.mxu0 0.0
    %583 = vmatprep.subr.mxu0 0.0
    %584 = vmatpush2.msra.mxu0 0.0
    %585 = vmatprep.subr.mxu0 0.0
    %586 = vmatpush2.msra.mxu0 0.0
    %587 = vmatprep.subr.mxu0 0.0
    %588 = vmatpush2.msra.mxu0 0.0
    %589 = vmatprep.subr.mxu0 0.0
    %590 = vmatpush2.msra.mxu0 0.0
    %591 = vmatprep.subr.mxu0 0.0
    %592 = vmatpush2.msra.mxu0 0.0
    %593 = vmatprep.subr.mxu0 0.0
    %594 = vmatpush2.msra.mxu0 0.0
    %595 = vmatprep.subr.mxu0 0.0
    %596 = vmatpush2.msra.mxu0 0.0
    %597 = vmatprep.subr.mxu0 0.0
    %598 = vmatpush2.msra.mxu0 0.0
    %599 = vmatprep.subr.mxu0 0.0
    %600 = vmatpush2.msra.mxu0 0.0
    %601 = vmatprep.subr.mxu0 0.0
    %602 = vmatpush2.msra.mxu0 0.0
    %603 = vmatprep.subr.mxu0 0.0
    %604 = vmatpush2.msra.mxu0 0.0
    %605 = vmatprep.subr.mxu0 0.0
    %606 = vmatpush2.msra.mxu0 0.0
    %607 = vmatprep.subr.mxu0 0.0
    %608 = vmatpush2.msra.mxu0 0.0
    %609 = vmatprep.subr.mxu0 0.0
    %610 = vmatpush2.msra.mxu0 0.0
    %611 = vmatprep.subr.mxu0 0.0
    %612 = vmatpush2.msra.mxu0 0.0
    %613 = vmatprep.mubr.f32.mxu0 0.0
    %614 = vmatmul.mubr.f32.gmra.mxu0 %v544
    %v615 = vpop.f32.mrf.mxu0
    %v616 = vadd.f32 %v540, %v615
    %v617 = vpop.f32.mrf.mxu0
    %618 = vmatprep.mubr.f32.mxu0 0.0
    %619 = vmatmul.mubr.f32.gmra.mxu0 %v547
    %v620 = vpop.f32.mrf.mxu0
    %v621 = vadd.f32 %v540, %v620
    %v622 = vpop.f32.mrf.mxu0
    %623 = vdwg.mxu0
    %624 = vst [vmem:[#allocation11] sm:$0xff] %v616
    %625 = vst [vmem:[#allocation11 + $0x8] sm:$0xff] %v621
    %v626 = vld [vmem:[#allocation10] sm:$0xff]
    %v627 = vld [vmem:[#allocation10 + $0x8] sm:$0xff]
    %v628 = vld [vmem:[#allocation10 + $0x10] sm:$0xff]
    %v629 = vld [vmem:[#allocation10 + $0x18] sm:$0xff]
    %v630 = vld [vmem:[#allocation10 + $0x20] sm:$0xff]
    %v631 = vld [vmem:[#allocation10 + $0x28] sm:$0xff]
    %v632 = vld [vmem:[#allocation10 + $0x30] sm:$0xff]
    %v633 = vld [vmem:[#allocation10 + $0x38] sm:$0xff]
    %634 = vmatprep.subr.mxu0 0.0
    %635 = vmatpush1.msra.mxu0 0.0
    %636 = vmatprep.subr.mxu0 0.0
    %637 = vmatpush1.msra.mxu0 0.0
    %638 = vmatprep.subr.mxu0 0.0
    %639 = vmatpush1.msra.mxu0 0.0
    %640 = vmatprep.subr.mxu0 0.0
    %641 = vmatpush1.msra.mxu0 0.0
    %642 = vmatprep.subr.mxu0 0.0
    %643 = vmatpush1.msra.mxu0 0.0
    %644 = vmatprep.subr.mxu0 0.0
    %645 = vmatpush1.msra.mxu0 0.0
    %646 = vmatprep.subr.mxu0 0.0
    %647 = vmatpush1.msra.mxu0 0.0
    %648 = vmatprep.subr.mxu0 0.0
    %649 = vmatpush1.msra.mxu0 0.0
    %650 = vmatprep.subr.mxu0 0.0
    %651 = vmatpush1.msra.mxu0 %v633
    %652 = vmatprep.subr.mxu0 0.0
    %653 = vmatpush1.msra.mxu0 %v632
    %654 = vmatprep.subr.mxu0 0.0
    %655 = vmatpush1.msra.mxu0 %v631
    %656 = vmatprep.subr.mxu0 0.0
    %657 = vmatpush1.msra.mxu0 %v630
    %658 = vmatprep.subr.mxu0 0.0
    %659 = vmatpush1.msra.mxu0 %v629
    %660 = vmatprep.subr.mxu0 0.0
    %661 = vmatpush1.msra.mxu0 %v628
    %662 = vmatprep.subr.mxu0 0.0
    %663 = vmatpush1.msra.mxu0 %v627
    %664 = vmatprep.subr.mxu0 0.0
    %665 = vmatpush1.msra.mxu0 %v626
    %666 = vmatprep.subr.mxu0 0.0
    %667 = vmatpush2.msra.mxu0 0.0
    %668 = vmatprep.subr.mxu0 0.0
    %669 = vmatpush2.msra.mxu0 0.0
    %670 = vmatprep.subr.mxu0 0.0
    %671 = vmatpush2.msra.mxu0 0.0
    %672 = vmatprep.subr.mxu0 0.0
    %673 = vmatpush2.msra.mxu0 0.0
    %674 = vmatprep.subr.mxu0 0.0
    %675 = vmatpush2.msra.mxu0 0.0
    %676 = vmatprep.subr.mxu0 0.0
    %677 = vmatpush2.msra.mxu0 0.0
    %678 = vmatprep.subr.mxu0 0.0
    %679 = vmatpush2.msra.mxu0 0.0
    %680 = vmatprep.subr.mxu0 0.0
    %681 = vmatpush2.msra.mxu0 0.0
    %682 = vmatprep.subr.mxu0 0.0
    %683 = vmatpush2.msra.mxu0 0.0
    %684 = vmatprep.subr.mxu0 0.0
    %685 = vmatpush2.msra.mxu0 0.0
    %686 = vmatprep.subr.mxu0 0.0
    %687 = vmatpush2.msra.mxu0 0.0
    %688 = vmatprep.subr.mxu0 0.0
    %689 = vmatpush2.msra.mxu0 0.0
    %690 = vmatprep.subr.mxu0 0.0
    %691 = vmatpush2.msra.mxu0 0.0
    %692 = vmatprep.subr.mxu0 0.0
    %693 = vmatpush2.msra.mxu0 0.0
    %694 = vmatprep.subr.mxu0 0.0
    %695 = vmatpush2.msra.mxu0 0.0
    %696 = vmatprep.subr.mxu0 0.0
    %697 = vmatpush2.msra.mxu0 0.0
    %698 = vmatprep.mubr.f32.mxu0 0.0
    %699 = vmatmul.mubr.f32.gmra.mxu0 %v544
    %v700 = vpop.f32.mrf.mxu0
    %v701 = vadd.f32 0.0, %v700
    %v702 = vpop.f32.mrf.mxu0
    %703 = vmatprep.mubr.f32.mxu0 0.0
    %704 = vmatmul.mubr.f32.gmra.mxu0 %v547
    %v705 = vpop.f32.mrf.mxu0
    %v706 = vadd.f32 0.0, %v705
    %v707 = vpop.f32.mrf.mxu0
    %708 = vdwg.mxu0
    %709 = vst [vmem:[#allocation12] sm:$0xff] %v701
    %710 = vst [vmem:[#allocation12 + $0x8] sm:$0xff] %v706
    // Predicated region
    $region50: #{tpu_custom_call.1} parent=1 // pred_check
      _
    $region51: #{tpu_custom_call.1} parent=1 // pred_check_branch
      %712 = sbr.rel (0) target = $region53
    $region52: #{tpu_custom_call.1} parent=1 // pred_region
      %s714 = ssub.s32 256, 256
      %715 = vsyncadd [#allocation4], %s714
      %s716 = sshll.u32 [#allocation11], 4
      %s717 = int_to_ptr.vmem [resolvable:$true] %s716
      %722 = dma.vmem_to_hbm [thread:$0]  %s717, 256, %s7, [#allocation4], 128, 128, 8
    $region53: #{tpu_custom_call.1} parent=1 // pred_fallthru
      _
    // Predicated region
    $region54: #{tpu_custom_call.1} parent=1 // pred_check
      _
    $region55: #{tpu_custom_call.1} parent=1 // pred_check_branch
      %724 = sbr.rel (0) target = $region57
    $region56: #{tpu_custom_call.1} parent=1 // pred_region
      %s726 = ssub.s32 256, 256
      %727 = vsyncadd [#allocation13], %s726
      %s728 = sshll.u32 [#allocation12], 4
      %s729 = int_to_ptr.vmem [resolvable:$true] %s728
      %734 = dma.vmem_to_hbm [thread:$0]  %s729, 256, %s8, [#allocation13], 128, 128, 8
    $region57: #{tpu_custom_call.1} parent=1 // pred_fallthru
      _
    // Predicated region
    $region58: #{tpu_custom_call.1} parent=1 // pred_check
      _
    $region59: #{tpu_custom_call.1} parent=1 // pred_check_branch
      %736 = sbr.rel (0) target = $region61
    $region60: #{tpu_custom_call.1} parent=1 // pred_region
      %737 = dma.done [#allocation4], 256
    $region61: #{tpu_custom_call.1} parent=1 // pred_fallthru
      _
    // Predicated region
    $region62: #{tpu_custom_call.1} parent=1 // pred_check
      _
    $region63: #{tpu_custom_call.1} parent=1 // pred_check_branch
      %739 = sbr.rel (0) target = $region65
    $region64: #{tpu_custom_call.1} parent=1 // pred_region
      %740 = dma.done [#allocation13], 256
    $region65: #{tpu_custom_call.1} parent=1 // pred_fallthru
      _
    %741 = vsyncpa [#allocation3], 1
    %742 = vsyncpa [#allocation6], 1
    %743 = vsyncpa [#allocation9], 1
    %744 = vsyncpa [#allocation4], 1
    %745 = vsyncpa [#allocation13], 1

</llo_original>
